<compile_context>
chip_gen: v6e
topology: v6e:2x2x1
jax: 0.10.0
libtpu: 0.0.40
codegen_flags: <defaults>
</compile_context>

<pallas_src>
import jax
import jax.numpy as jnp
from jax.experimental import pallas as pl
from jax.experimental.pallas import tpu as pltpu


_SEM_SLOTS = 4            # outstanding output DMAs in the ring
_SLAB_CAP_BYTES = 16 << 20  # hard cap on the single VMEM slab


def _choose_rows(batch_size: int, row_bytes: int, itemsize: int,
                 target_bytes: int, slab_cap_bytes: int) -> int:
    """How many batch rows go into the single VMEM slab."""
    # Sublane packing unit per dtype: f32 -> 8, bf16 -> 16, int8/fp8 -> 32.
    sub = max(8, 32 // max(itemsize, 1))
    budget = min(target_bytes, slab_cap_bytes)
    max_rows = max(1, budget // max(row_bytes, 1))
    if batch_size <= max_rows:
        return batch_size            # whole batch fits one slab
    rows = max_rows
    if rows > sub:
        rows -= rows % sub           # keep dtype sublane packing
    rows = max(1, min(rows, batch_size))
    # Prefer a divisor of batch_size (multiple of sub) -> no ragged tail DMA.
    if rows >= sub:
        for cand in range(rows - rows % sub, sub - 1, -sub):
            if batch_size % cand == 0:
                return cand
    return rows


def _make_broadcast_dma_kernel(b_blk: int, n_full: int, rem: int):
    """Fill a VMEM slab with the broadcast prompt once, then DMA it to every
    batch slice of the HBM output using a ring of DMA semaphores."""

    def kernel(prompt_ref, out_hbm, slab, sems):
        b = pl.program_id(0)

        # --- fill the slab exactly once (step 0) -------------------------
        @pl.when(b == 0)
        def _fill_once():
            p = prompt_ref[...]
            slab[...] = jnp.broadcast_to(
                p.reshape((1,) + slab.shape[1:]), slab.shape)

        slot = b % _SEM_SLOTS

        # --- retire the DMA that last used this semaphore slot -----------
        @pl.when(b >= _SEM_SLOTS)
        def _retire_old():
            pltpu.make_async_copy(
                slab, out_hbm.at[pl.ds(0, b_blk)], sems.at[slot]).wait()

        # --- issue this step's output DMA (slab -> HBM batch slice) ------
        pltpu.make_async_copy(
            slab, out_hbm.at[pl.ds(b * b_blk, b_blk)], sems.at[slot]).start()

        # --- final step: ragged tail + drain all outstanding DMAs --------
        @pl.when(b == n_full - 1)
        def _finalize():
            if rem > 0:
                pltpu.make_async_copy(
                    slab.at[pl.ds(0, rem)],
                    out_hbm.at[pl.ds(n_full * b_blk, rem)],
                    sems.at[_SEM_SLOTS]).start()
            for k in range(min(_SEM_SLOTS, n_full)):
                s = (n_full - 1 - k) % _SEM_SLOTS
                pltpu.make_async_copy(
                    slab, out_hbm.at[pl.ds(0, b_blk)], sems.at[s]).wait()
            if rem > 0:
                pltpu.make_async_copy(
                    slab.at[pl.ds(0, rem)],
                    out_hbm.at[pl.ds(0, rem)],
                    sems.at[_SEM_SLOTS]).wait()

    return kernel


def prompt_projector_forward(prompt: jax.Array, batch_size: int, *,
                             min_pallas_bytes: int = 1 << 20,
                             target_block_bytes: int = 8 << 20) -> jax.Array:
    """Broadcast the (L, H) prompt to (B, L, H) (== PromptProjector.forward)."""
    L, H = prompt.shape
    itemsize = jnp.dtype(prompt.dtype).itemsize
    row_bytes = L * H * itemsize
    total_bytes = batch_size * row_bytes

    # Tiny output: plain XLA broadcast is strictly faster than a kernel launch.
    if total_bytes < min_pallas_bytes:
        return jnp.broadcast_to(prompt[None, :, :], (batch_size, L, H))

    use_3d = (H % 128 == 0)
    if use_3d:
        # Natural (L, H) prompt block: no sublane padding blow-up, and a
        # (b_blk, L, H) slab is already lane-dense.
        prompt_in = prompt
        prompt_block = (L, H)
        out_shape = (batch_size, L, H)
        tail_shape = (L, H)
    else:
        # Non-128-aligned H: flatten so the HBM rows are lane-dense anyway.
        # (The (1, L*H) tile is sublane-padded; acceptable for the small-H
        # shapes that hit this path.)
        prompt_in = prompt.reshape(1, L * H)
        prompt_block = (1, L * H)
        out_shape = (batch_size, L * H)
        tail_shape = (L * H,)

    b_blk = _choose_rows(batch_size, row_bytes, itemsize,
                         target_block_bytes, _SLAB_CAP_BYTES)
    n_full = batch_size // b_blk
    rem = batch_size - n_full * b_blk

    kernel = _make_broadcast_dma_kernel(b_blk, n_full, rem)

    out = pl.pallas_call(
        kernel,
        out_shape=jax.ShapeDtypeStruct(out_shape, prompt.dtype),
        grid_spec=pltpu.PrefetchScalarGridSpec(
            num_scalar_prefetch=0,
            grid=(n_full,),
            in_specs=[
                # Constant index_map: the prompt is DMA'd into VMEM once.
                pl.BlockSpec(prompt_block, lambda b: (0, 0)),
            ],
            # Output stays in HBM; we write it with explicit async DMAs.
            out_specs=pl.BlockSpec(memory_space=pl.ANY),
            scratch_shapes=[
                pltpu.VMEM((b_blk,) + tail_shape, prompt.dtype),  # the slab
                pltpu.SemaphoreType.DMA((_SEM_SLOTS + 1,)),       # ring + tail
            ],
        ),
        compiler_params=pltpu.CompilerParams(
            # The DMA ring's bookkeeping assumes sequential grid execution.
            dimension_semantics=("arbitrary",),
            vmem_limit_bytes=48 << 20,
        ),
        cost_estimate=pl.CostEstimate(
            flops=0, transcendentals=0,
            bytes_accessed=total_bytes + row_bytes),
    )(prompt_in)

    return out if use_3d else out.reshape(batch_size, L, H)


if __name__ == "__main__":
    # Small shapes consistent with the module (prompt_length=8, hidden=128).
    prompt_length = 8
    hidden_size = 128
    batch_size = 2

    key = jax.random.PRNGKey(0)
    prompt = jax.random.normal(key, (prompt_length, hidden_size), dtype=jnp.float32)

    # Force the Pallas path even though the demo output is tiny.
    out = prompt_projector_forward(prompt, batch_size, min_pallas_bytes=0)
    out = jax.block_until_ready(out)

    ref = jnp.broadcast_to(prompt[None, :, :],
                           (batch_size, prompt_length, hidden_size))
    assert out.shape == (batch_size, prompt_length, hidden_size)
    assert out.dtype == prompt.dtype
    assert jnp.array_equal(out, ref)

    # Exercise the multi-slab DMA ring + ragged-tail DMA with a tiny block
    # target (b_blk=4 -> 4 full slabs + a 3-row tail for batch=19).
    out2 = prompt_projector_forward(prompt, 19, min_pallas_bytes=0,
                                    target_block_bytes=16 << 10)
    out2 = jax.block_until_ready(out2)
    ref2 = jnp.broadcast_to(prompt[None, :, :],
                            (19, prompt_length, hidden_size))
    assert jnp.array_equal(out2, ref2)

    print("KERNEL_OK")
</pallas_src>

<mosaic_0001>
module attributes {stable_mosaic.version = 11 : i64} {
  func.func @kernel(%arg0: i32, %arg1: memref<8x128xf32, #tpu.memory_space<vmem>>, %arg2: memref<2x8x128xf32, #tpu.memory_space<any>>, %arg3: memref<2x8x128xf32, #tpu.memory_space<vmem>>, %arg4: memref<5x!tpu.dma_semaphore, #tpu.memory_space<semaphore_mem>>) attributes {dimension_semantics = [#tpu.dimension_semantics<arbitrary>], iteration_bounds = array<i64: 1>, scalar_prefetch = 0 : i64, scratch_operands = 2 : i64, tpu.core_type = #tpu.core_type<tc>, window_params = [{pipeline_mode = #tpu.pipeline_mode<synchronous>, transform_indices = @transform_0, window_bounds = array<i64: 8, 128>}, {}]} {
    %c0_i32 = arith.constant 0 : i32
    %0 = arith.cmpi eq, %arg0, %c0_i32 : i32
    %1 = arith.extui %0 : i1 to i32
    %c0_i32_0 = arith.constant 0 : i32
    %2 = arith.cmpi ne, %1, %c0_i32_0 : i32
    scf.if %2 {
      %c0 = arith.constant 0 : index
      %c0_11 = arith.constant 0 : index
      %23 = vector.load %arg1[%c0, %c0_11] : memref<8x128xf32, #tpu.memory_space<vmem>>, vector<8x128xf32>
      %24 = vector.shape_cast %23 : vector<8x128xf32> to vector<1x8x128xf32>
      %25 = vector.shape_cast %24 : vector<1x8x128xf32> to vector<1x8x128xf32>
      %26 = vector.broadcast %25 : vector<1x8x128xf32> to vector<2x8x128xf32>
      %c0_12 = arith.constant 0 : index
      %c0_13 = arith.constant 0 : index
      %c0_14 = arith.constant 0 : index
      %27 = vector.load %arg3[%c0_12, %c0_13, %c0_14] : memref<2x8x128xf32, #tpu.memory_space<vmem>>, vector<2x8x128xf32>
      tpu.vector_store %arg3[%c0_12, %c0_13, %c0_14], %26 {strides = array<i32>} : memref<2x8x128xf32, #tpu.memory_space<vmem>>, vector<2x8x128xf32>,
    } else {
    }
    %c4_i32 = arith.constant 4 : i32
    %c0_i32_1 = arith.constant 0 : i32
    %3 = arith.cmpi eq, %c4_i32, %c0_i32_1 : i32
    %c1_i32 = arith.constant 1 : i32
    %4 = arith.select %3, %c1_i32, %c4_i32 : i32
    %5 = arith.remsi %arg0, %4 : i32
    %c0_i32_2 = arith.constant 0 : i32
    %6 = arith.cmpi ne, %5, %c0_i32_2 : i32
    %c0_i32_3 = arith.constant 0 : i32
    %7 = arith.cmpi slt, %5, %c0_i32_3 : i32
    %c0_i32_4 = arith.constant 0 : i32
    %8 = arith.cmpi slt, %4, %c0_i32_4 : i32
    %9 = arith.xori %7, %8 : i1
    %10 = arith.andi %9, %6 : i1
    %11 = arith.addi %5, %4 : i32
    %12 = arith.select %10, %11, %5 : i32
    %c4_i32_5 = arith.constant 4 : i32
    %13 = arith.cmpi sge, %arg0, %c4_i32_5 : i32
    %14 = arith.extui %13 : i1 to i32
    %c0_i32_6 = arith.constant 0 : i32
    %15 = arith.cmpi ne, %14, %c0_i32_6 : i32
    scf.if %15 {
      %c0_i32_11 = arith.constant 0 : i32
      %c0_i32_12 = arith.constant 0 : i32
      %c0_i32_13 = arith.constant 0 : i32
      %23 = tpu.memref_slice %arg2[%c0_i32_11, %c0_i32_12, %c0_i32_13] : memref<2x8x128xf32, #tpu.memory_space<any>> -> memref<2x8x128xf32, #tpu.memory_space<any>>
      %24 = tpu.memref_slice %arg4[%12] : memref<5x!tpu.dma_semaphore, #tpu.memory_space<semaphore_mem>> -> memref<1x!tpu.dma_semaphore, #tpu.memory_space<semaphore_mem>>
      %25 = tpu.memref_squeeze %24 : memref<1x!tpu.dma_semaphore, #tpu.memory_space<semaphore_mem>> -> memref<!tpu.dma_semaphore, #tpu.memory_space<semaphore_mem>>
      tpu.wait_dma2 semaphore(%25 : memref<!tpu.dma_semaphore, #tpu.memory_space<semaphore_mem>>) src(%arg3 : memref<2x8x128xf32, #tpu.memory_space<vmem>>) dst(%23 : memref<2x8x128xf32, #tpu.memory_space<any>>)
    } else {
    }
    %c2_i32 = arith.constant 2 : i32
    %16 = arith.muli %arg0, %c2_i32 : i32
    %c0_i32_7 = arith.constant 0 : i32
    %c0_i32_8 = arith.constant 0 : i32
    %17 = tpu.memref_slice %arg2[%16, %c0_i32_7, %c0_i32_8] : memref<2x8x128xf32, #tpu.memory_space<any>> -> memref<2x8x128xf32, #tpu.memory_space<any>>
    %18 = tpu.memref_slice %arg4[%12] : memref<5x!tpu.dma_semaphore, #tpu.memory_space<semaphore_mem>> -> memref<1x!tpu.dma_semaphore, #tpu.memory_space<semaphore_mem>>
    %19 = tpu.memref_squeeze %18 : memref<1x!tpu.dma_semaphore, #tpu.memory_space<semaphore_mem>> -> memref<!tpu.dma_semaphore, #tpu.memory_space<semaphore_mem>>
    tpu.enqueue_dma source(%arg3 : memref<2x8x128xf32, #tpu.memory_space<vmem>>) target(%17 : memref<2x8x128xf32, #tpu.memory_space<any>>) target_semaphore(%19 : memref<!tpu.dma_semaphore, #tpu.memory_space<semaphore_mem>>)
    %c0_i32_9 = arith.constant 0 : i32
    %20 = arith.cmpi eq, %arg0, %c0_i32_9 : i32
    %21 = arith.extui %20 : i1 to i32
    %c0_i32_10 = arith.constant 0 : i32
    %22 = arith.cmpi ne, %21, %c0_i32_10 : i32
    scf.if %22 {
      %c0_i32_11 = arith.constant 0 : i32
      %c0_i32_12 = arith.constant 0 : i32
      %c0_i32_13 = arith.constant 0 : i32
      %c0_i32_14 = arith.constant 0 : i32
      %23 = tpu.memref_slice %arg2[%c0_i32_12, %c0_i32_13, %c0_i32_14] : memref<2x8x128xf32, #tpu.memory_space<any>> -> memref<2x8x128xf32, #tpu.memory_space<any>>
      %24 = tpu.memref_slice %arg4[%c0_i32_11] : memref<5x!tpu.dma_semaphore, #tpu.memory_space<semaphore_mem>> -> memref<1x!tpu.dma_semaphore, #tpu.memory_space<semaphore_mem>>
      %25 = tpu.memref_squeeze %24 : memref<1x!tpu.dma_semaphore, #tpu.memory_space<semaphore_mem>> -> memref<!tpu.dma_semaphore, #tpu.memory_space<semaphore_mem>>
      tpu.wait_dma2 semaphore(%25 : memref<!tpu.dma_semaphore, #tpu.memory_space<semaphore_mem>>) src(%arg3 : memref<2x8x128xf32, #tpu.memory_space<vmem>>) dst(%23 : memref<2x8x128xf32, #tpu.memory_space<any>>)
    } else {
    }
    return
  }
  func.func @transform_0(%arg0: i32) -> (i32, i32) {
    %c0_i32 = arith.constant 0 : i32
    %c0_i32_0 = arith.constant 0 : i32
    %c0_i32_1 = arith.constant 0 : i32
    return %c0_i32, %c0_i32_0 : i32, i32
  }
}

</mosaic_0001>

<llo_original>
// kernel: tpu_custom_call.1
$region0: #{tpu_custom_call.1}
  #allocation0 [shape = 'u32[]', space=smem, size = 0x4, offset = 0x4, fixed_abs, tag = 'smem constant byte address 0x4 - core index']
  #allocation1 [shape = 'u32[144,128]{1,0:T(1,128)}', space=vmem, size = 0x12000, scoped, tag = 'internal scratch']
  #allocation2 [shape = 'f32[2,8,128]{2,1,0:T(8,128)}', space=vmem, size = 0x2000, scoped, tag = 'scratch operand']
  #allocation3 [shape = 's32[5]{0}', space=sflag, size = 0x14, scoped, tag = 'scratch operand']
  #allocation6 [shape = 's32[]', space=sflag, size = 0x4, offset = 0, fixed_abs, tag = 'sflag constant byte address 0x0 - dummy sync flag']
  #allocation7 [shape = 's32[]', space=sflag, size = 0x4, offset = 0, fixed_abs, tag = 'sflag constant byte address 0x0 - dummy sync flag']
  #allocation8 [shape = 'u32[]', space=smem, size = 0x4, offset = 0x44, fixed_abs, tag = 'smem constant byte address 0x44 - assertion arg 0']
  #allocation9 [shape = 'u32[]', space=smem, size = 0x4, offset = 0x48, fixed_abs, tag = 'smem constant byte address 0x48 - assertion arg 1']
  %s0 = inlined_call_operand.hbm [shape: f32[8,128], index: 0, kind: input, shape index: {}]
  %s1 = inlined_call_operand.hbm [shape: f32[2,8,128], index: 1, kind: output, shape index: {}]
  %s2 = sld [smem:[#allocation0]]
  $region26: #{tpu_custom_call.1} parent=0
    _
  %s4 = ssub.s32 1, %s2
  %s5 = scalar_select 0, %s4, %s2
  $region1: #{tpu_custom_call.1} parent=0
    #allocation4 [shape = 'u8[4096]{0}', space=vmem, size = 0x1000, scoped, tag = 'input window, operand 0, single buffered']
    #allocation5 [shape = 's32[1]{0}', space=sflag, size = 0x4, scoped, tag = 'scoped memory for tpu_custom_call.1']
    %6 = vsyncpa [#allocation5], 0
    // Predicated region
    $region2: #{tpu_custom_call.1} parent=1 // pred_check
      _
    $region3: #{tpu_custom_call.1} parent=1 // pred_check_branch
      %8 = sbr.rel (0) target = $region5
    $region4: #{tpu_custom_call.1} parent=1 // pred_region
      %s10 = ssub.s32 128, 128
      %11 = vsyncadd [#allocation5], %s10
      %s13 = sshll.u32 [#allocation4], 4
      %s14 = int_to_ptr.vmem [resolvable:$true] %s13
      %16 = dma.hbm_to_vmem [thread:$0]  %s0, 128, %s14, [#allocation5]
    $region5: #{tpu_custom_call.1} parent=1 // pred_fallthru
      _
    // Predicated region
    $region6: #{tpu_custom_call.1} parent=1 // pred_check
      _
    $region7: #{tpu_custom_call.1} parent=1 // pred_check_branch
      %18 = sbr.rel (0) target = $region9
    $region8: #{tpu_custom_call.1} parent=1 // pred_region
      %19 = dma.done [#allocation5], 128
    $region9: #{tpu_custom_call.1} parent=1 // pred_fallthru
      _
    %p20 = scmp.eq.s32.totalorder 0, 0
    // Predicated region
    $region10: #{tpu_custom_call.1} parent=1 // pred_check
      %p21 = pneg %p20
    $region11: #{tpu_custom_call.1} parent=1 // pred_check_branch
      %23 = sbr.rel (%p21) target = $region13
    $region12: #{tpu_custom_call.1} parent=1 // pred_region
      %v24 = vld [vmem:[#allocation4] sm:$0xff]
      %25 = vst [vmem:[#allocation2] sm:$0xff] %v24
      %26 = vst [vmem:[#allocation2 + $0x8] sm:$0xff] %v24
    $region13: #{tpu_custom_call.1} parent=1 // pred_fallthru
      _
    %s27 = ssub.s32 0, 0
    %s28 = ssub.s32 0, 0
    %p29 = scmp.ne.s32.totalorder 0, 0
    %p30 = scmp.lt.s32.totalorder 0, 0
    %p31 = pnand %p30, %p29
    %p32 = pneg %p31
    %s33 = sadd.s32 0, 4
    %s34 = scalar_select %p32, %s33, 0
    %p35 = scmp.ge.s32.totalorder 0, 4
    // Predicated region
    $region14: #{tpu_custom_call.1} parent=1 // pred_check
      %p36 = pneg %p35
    $region15: #{tpu_custom_call.1} parent=1 // pred_check_branch
      %38 = sbr.rel (%p36) target = $region17
    $region16: #{tpu_custom_call.1} parent=1 // pred_region
      %s39 = scalar_lea.sflag [#allocation3], %s34
      %s40 = smul.u32 2, 8
      %s41 = smul.u32 %s40, 1
      %s42 = sshll.u32 %s41, 4
      %43 = dma.done %s39, %s42
    $region17: #{tpu_custom_call.1} parent=1 // pred_fallthru
      _
    %s44 = smul.u32 0, 2
    %s45 = smul.u32 %s44, 8
    %s46 = smul.addr %s45, 16
    %s47 = scalar_lea.hbm %s1, %s46
    %s48 = scalar_lea.sflag [#allocation3], %s34
    // Predicated region
    $region18: #{tpu_custom_call.1} parent=1 // pred_check
      _
    $region19: #{tpu_custom_call.1} parent=1 // pred_check_branch
      %50 = sbr.rel target = $region21
    $region20: #{tpu_custom_call.1} parent=1 // pred_region
      %51 = sst [smem:[#allocation8]] [#allocation7]
      %52 = sst [smem:[#allocation9]] [#allocation6]
    $region21: #{tpu_custom_call.1} parent=1 // pred_fallthru
      _
    %54 = shalt.err (0)
    %s56 = sshll.u32 [#allocation2], 4
    %s57 = int_to_ptr.vmem [resolvable:$true] %s56
    %59 = dma.vmem_to_hbm [thread:$0]  %s57, 256, %s47, %s48
    // Predicated region
    $region22: #{tpu_custom_call.1} parent=1 // pred_check
      %p60 = pneg %p20
    $region23: #{tpu_custom_call.1} parent=1 // pred_check_branch
      %62 = sbr.rel (%p60) target = $region25
    $region24: #{tpu_custom_call.1} parent=1 // pred_region
      %s63 = smul.u32 2, 8
      %s64 = smul.u32 %s63, 1
      %s65 = sshll.u32 %s64, 4
      %66 = dma.done [#allocation3], %s65
    $region25: #{tpu_custom_call.1} parent=1 // pred_fallthru
      _
    %67 = vsyncpa [#allocation5], 1
  %68 = vsyncmov [#allocation3]
  %s69 = vpop.sfrf %68
  %p70 = scmp.eq.s32.totalorder %s69, 0
  %p71 = pneg %p70
  %73 = shalt.err (%p71)
  %s74 = scalar_lea.sflag [#allocation3], 1
  %75 = vsyncmov %s74
  %s76 = vpop.sfrf %75
  %p77 = scmp.eq.s32.totalorder %s76, 0
  %p78 = pneg %p77
  %80 = shalt.err (%p78)
  %s81 = scalar_lea.sflag [#allocation3], 2
  %82 = vsyncmov %s81
  %s83 = vpop.sfrf %82
  %p84 = scmp.eq.s32.totalorder %s83, 0
  %p85 = pneg %p84
  %87 = shalt.err (%p85)
  %s88 = scalar_lea.sflag [#allocation3], 3
  %89 = vsyncmov %s88
  %s90 = vpop.sfrf %89
  %p91 = scmp.eq.s32.totalorder %s90, 0
  %p92 = pneg %p91
  %94 = shalt.err (%p92)
  %s95 = scalar_lea.sflag [#allocation3], 4
  %96 = vsyncmov %s95
  %s97 = vpop.sfrf %96
  %p98 = scmp.eq.s32.totalorder %s97, 0
  %p99 = pneg %p98
  %101 = shalt.err (%p99)

</llo_original>
